<compile_context>
chip_gen: v7x
topology: tpu7x:2x2x1
jax: 0.10.0
libtpu: 0.0.40
codegen_flags: <defaults>
</compile_context>

<pallas_src>
import functools

import jax
import jax.numpy as jnp
from jax import lax
from jax.experimental import pallas as pl
from jax.experimental.pallas import tpu as pltpu


def _ls_ce_kernel(preds_ref, target_ref, out_ref, acc_loss_ref, acc_nll_ref,
                  *, bm, n_rows, blocks_per_split):
    p = pl.program_id(0)          # parallel split (per-TensorCore on multi-TC chips)
    j = pl.program_id(1)          # sequential reduction step within the split

    @pl.when(j == 0)
    def _():
        acc_loss_ref[...] = jnp.zeros_like(acc_loss_ref)
        acc_nll_ref[...] = jnp.zeros_like(acc_nll_ref)

    x_raw = preds_ref[...]                     # (bm, C), native dtype (f32 or bf16)
    t = target_ref[...]                        # (bm, 1) int32

    # Row max on the raw tile: exact in any dtype, half VALU width for bf16.
    m = jnp.max(x_raw, axis=-1, keepdims=True).astype(jnp.float32)      # (bm, 1)
    x = x_raw.astype(jnp.float32)
    xm = x - m                                                           # (bm, C)

    # lse - m = log(sum exp(x - m)); stays small (<= log C), no cancellation.
    lse_m = jnp.log(jnp.sum(jnp.exp(xm), axis=-1, keepdims=True))        # (bm, 1)

    c = jnp.float32(x_raw.shape[-1])
    # sum_c log_softmax(x)[c] = sum_c (x - m) - C * (lse - m)
    row_sum_logp = jnp.sum(xm, axis=-1, keepdims=True) - c * lse_m       # (bm, 1)
    # log_softmax(x)[t] = (x[t] - m) - (lse - m)   (one-hot select, VPU only)
    col = lax.broadcasted_iota(jnp.int32, xm.shape, 1)
    picked_logp = jnp.sum(jnp.where(col == t, xm, 0.0),
                          axis=-1, keepdims=True) - lse_m                # (bm, 1)

    # Select-based mask for rows past the end of the batch (partial/clamped blocks).
    vb = p * blocks_per_split + j                         # virtual block index
    row_ids = vb * bm + lax.broadcasted_iota(jnp.int32, (bm, 1), 0)
    valid = row_ids < n_rows

    # Collapse to per-step scalars: (1, 1) accumulators avoid the 128x lane
    # padding of (bm, 1) resident accumulators.
    acc_loss_ref[...] += jnp.sum(jnp.where(valid, row_sum_logp, 0.0), keepdims=True)
    acc_nll_ref[...] += jnp.sum(jnp.where(valid, picked_logp, 0.0), keepdims=True)

    @pl.when(j == pl.num_programs(1) - 1)
    def _():
        loss_part = jnp.sum(acc_loss_ref[...])        # sum_i sum_c logp[i, c]
        nll_part = jnp.sum(acc_nll_ref[...])          # sum_i logp[i, target[i]]
        lane = lax.broadcasted_iota(jnp.int32, out_ref.shape, 1)
        out_ref[...] = (jnp.where(lane == 0, loss_part, 0.0) +
                        jnp.where(lane == 1, nll_part, 0.0))


def _tpu_info():
    try:
        return pltpu.get_tpu_info()
    except Exception:
        return None


def _vmem_capacity_bytes():
    info = _tpu_info()
    if info is not None:
        try:
            v = int(getattr(info, "vmem_capacity_bytes", 0))
            if v > 0:
                return v
        except Exception:
            pass
    return 64 << 20          # conservative default (v7x per-TensorCore VMEM)


def _tensorcore_count():
    info = _tpu_info()
    if info is not None:
        for name in ("num_cores", "core_count", "num_tensorcores",
                     "tensorcores_per_chip", "cores_per_chip"):
            try:
                v = int(getattr(info, name, 0))
            except Exception:
                continue
            if v >= 1:
                return v
    return 1                 # single TensorCore (v5e / v6e)


def label_smoothing_cross_entropy(preds, target, epsilon=0.1, *,
                                  block_rows=None, num_splits=None,
                                  target_tile_bytes=None,
                                  max_block_rows=2048):
    """Pallas implementation of LabelSmoothingCrossEntropy(reduction='mean').

    preds: (N, C) float32 or bfloat16 (bf16 halves HBM traffic; the kernel
    upcasts to float32 internally, except the exact row max). target: (N,) int.
    """
    N, C = preds.shape
    t2d = target.astype(jnp.int32).reshape(N, 1)
    itemsize = jnp.dtype(preds.dtype).itemsize

    vmem_cap = _vmem_capacity_bytes()
    if target_tile_bytes is None:
        # ~8 MiB tiles on 128 MiB-VMEM chips (v5e/v6e); ~6 MiB with headroom on
        # 64 MiB-per-TC chips (v7x).
        target_tile_bytes = (8 << 20) if vmem_cap >= (96 << 20) else (6 << 20)

    if block_rows is None:
        block_rows = (target_tile_bytes // (itemsize * C)) // 8 * 8
    if N < 8:
        block_rows = N                      # full-dim block (no sublane padding rule)
    else:
        block_rows = int(max(8, min(block_rows, (N // 8) * 8, max_block_rows)))

    total_blocks = -(-N // block_rows)
    if num_splits is None:
        num_splits = _tensorcore_count()    # 1 on v5e/v6e, >1 only on multi-TC chips
    num_splits = int(max(1, min(num_splits, total_blocks)))
    blocks_per_split = -(-total_blocks // num_splits)

    def pick_block(p, j):
        vb = p * blocks_per_split + j
        return (jnp.minimum(vb, total_blocks - 1), 0)

    kernel = functools.partial(
        _ls_ce_kernel, bm=block_rows, n_rows=N,
        blocks_per_split=blocks_per_split)

    # Explicit VMEM budget (lane-padded sizes): double-buffered preds + target
    # tiles, a few f32 tile-sized temporaries (upcast / exp / one-hot select),
    # (bm,1)->(bm,128)-padded row temporaries, output blocks and Mosaic-internal
    # headroom. Capped at 80% of physical VMEM (keeps headroom on v7x's 64 MiB
    # per TC while letting v5e/v6e use their 128 MiB).
    lanes = -(-C // 128) * 128
    in_buf = block_rows * lanes * itemsize
    tgt_buf = block_rows * 128 * 4
    f32_tile = block_rows * lanes * 4
    row_tmp = block_rows * 128 * 4
    vmem_bytes = (2 * in_buf + 2 * tgt_buf + 3 * f32_tile + 6 * row_tmp
                  + 2 * 8 * 128 * 4 + (4 << 20))
    vmem_limit = int(min(max(vmem_bytes, 16 << 20),
                         max(int(vmem_cap * 0.8), 16 << 20)))

    cost = pl.CostEstimate(
        flops=int(6 * N * C),
        transcendentals=int(N * C),
        bytes_accessed=int(N * C * itemsize + N * 4 + num_splits * 8 * 128 * 4))

    partials = pl.pallas_call(
        kernel,
        out_shape=jax.ShapeDtypeStruct((num_splits * 8, 128), jnp.float32),
        grid_spec=pltpu.PrefetchScalarGridSpec(
            num_scalar_prefetch=0,
            grid=(num_splits, blocks_per_split),
            in_specs=[
                pl.BlockSpec((block_rows, C), pick_block),
                pl.BlockSpec((block_rows, 1), pick_block),
            ],
            out_specs=pl.BlockSpec((8, 128), lambda p, j: (p, 0)),
            scratch_shapes=[
                pltpu.VMEM((1, 1), jnp.float32),   # sum_i sum_c logp[i, c]
                pltpu.VMEM((1, 1), jnp.float32),   # sum_i logp[i, target[i]]
            ],
        ),
        compiler_params=pltpu.CompilerParams(
            dimension_semantics=("parallel", "arbitrary"),
            vmem_limit_bytes=vmem_limit),
        cost_estimate=cost,
    )(preds, t2d)

    # Final combine of the per-split partials (trivial, done in plain JAX).
    parts = partials.reshape(num_splits, 8, 128)
    sum_logp = jnp.sum(parts[:, 0, 0])        # sum_i sum_c logp[i, c]
    sum_picked = jnp.sum(parts[:, 0, 1])      # sum_i logp[i, target[i]]
    loss = -sum_logp / N
    nll = -sum_picked / N
    return epsilon * (loss / C) + (1.0 - epsilon) * nll


def _reference(preds, target, epsilon=0.1):
    logp = jax.nn.log_softmax(preds.astype(jnp.float32), axis=-1)
    n = preds.shape[-1]
    loss = jnp.mean(-jnp.sum(logp, axis=-1))
    nll = jnp.mean(-jnp.take_along_axis(logp, target[:, None], axis=-1)[:, 0])
    return epsilon * (loss / n) + (1.0 - epsilon) * nll


if __name__ == "__main__":
    key = jax.random.PRNGKey(0)
    kp, kt = jax.random.split(key)

    # Main small-shape test (matches the module's (batch, classes) inputs).
    N, C = 16, 32
    preds = jax.random.normal(kp, (N, C), dtype=jnp.float32)
    target = jax.random.randint(kt, (N,), 0, C, dtype=jnp.int32)

    out = jax.block_until_ready(
        label_smoothing_cross_entropy(preds, target, epsilon=0.1))
    ref = _reference(preds, target, epsilon=0.1)
    assert jnp.allclose(out, ref, rtol=1e-5, atol=1e-5), (out, ref)

    # Ragged batch (N not a multiple of block_rows) exercising both splits,
    # block clamping and row masking.
    N2, C2 = 20, 32
    kp2, kt2 = jax.random.split(jax.random.PRNGKey(1))
    preds2 = jax.random.normal(kp2, (N2, C2), dtype=jnp.float32)
    target2 = jax.random.randint(kt2, (N2,), 0, C2, dtype=jnp.int32)
    out2 = jax.block_until_ready(
        label_smoothing_cross_entropy(preds2, target2, epsilon=0.1,
                                      block_rows=8, num_splits=2))
    ref2 = _reference(preds2, target2, epsilon=0.1)
    assert jnp.allclose(out2, ref2, rtol=1e-5, atol=1e-5), (out2, ref2)

    # bf16 preds path (halves HBM read traffic; exact row max in bf16, all
    # other math in f32 inside the kernel).
    preds_bf16 = preds.astype(jnp.bfloat16)
    out3 = jax.block_until_ready(
        label_smoothing_cross_entropy(preds_bf16, target, epsilon=0.1))
    ref3 = _reference(preds_bf16.astype(jnp.float32), target, epsilon=0.1)
    assert jnp.allclose(out3, ref3, rtol=1e-3, atol=1e-3), (out3, ref3)

    print("KERNEL_OK")
</pallas_src>

<mosaic_0001>
module attributes {stable_mosaic.version = 11 : i64} {
  func.func @_ls_ce_kernel(%arg0: i32, %arg1: i32, %arg2: memref<16x32xf32, #tpu.memory_space<vmem>>, %arg3: memref<16x1xi32, #tpu.memory_space<vmem>>, %arg4: memref<8x128xf32, #tpu.memory_space<vmem>>, %arg5: memref<1x1xf32, #tpu.memory_space<vmem>>, %arg6: memref<1x1xf32, #tpu.memory_space<vmem>>) attributes {dimension_semantics = [#tpu.dimension_semantics<parallel>, #tpu.dimension_semantics<arbitrary>], iteration_bounds = array<i64: 1, 1>, scalar_prefetch = 0 : i64, scratch_operands = 2 : i64, tpu.core_type = #tpu.core_type<tc>, window_params = [{transform_indices = @transform_0, window_bounds = array<i64: 16, 32>}, {transform_indices = @transform_1, window_bounds = array<i64: 16, 1>}, {transform_indices = @transform_2, window_bounds = array<i64: 8, 128>}]} {
    %c0_i32 = arith.constant 0 : i32
    %0 = arith.cmpi eq, %arg1, %c0_i32 : i32
    %1 = arith.extui %0 : i1 to i32
    %c0_i32_0 = arith.constant 0 : i32
    %2 = arith.cmpi ne, %1, %c0_i32_0 : i32
    scf.if %2 {
      %cst_24 = arith.constant 0.000000e+00 : f32
      %57 = vector.broadcast %cst_24 : f32 to vector<1x1xf32>
      %c0_25 = arith.constant 0 : index
      %c0_26 = arith.constant 0 : index
      %58 = vector.load %arg5[%c0_25, %c0_26] : memref<1x1xf32, #tpu.memory_space<vmem>>, vector<1x1xf32>
      tpu.vector_store %arg5[%c0_25, %c0_26], %57 {strides = array<i32>} : memref<1x1xf32, #tpu.memory_space<vmem>>, vector<1x1xf32>,
      %cst_27 = arith.constant 0.000000e+00 : f32
      %59 = vector.broadcast %cst_27 : f32 to vector<1x1xf32>
      %c0_28 = arith.constant 0 : index
      %c0_29 = arith.constant 0 : index
      %60 = vector.load %arg6[%c0_28, %c0_29] : memref<1x1xf32, #tpu.memory_space<vmem>>, vector<1x1xf32>
      tpu.vector_store %arg6[%c0_28, %c0_29], %59 {strides = array<i32>} : memref<1x1xf32, #tpu.memory_space<vmem>>, vector<1x1xf32>,
    } else {
    }
    %c0 = arith.constant 0 : index
    %c0_1 = arith.constant 0 : index
    %3 = vector.load %arg2[%c0, %c0_1] : memref<16x32xf32, #tpu.memory_space<vmem>>, vector<16x32xf32>
    %c0_2 = arith.constant 0 : index
    %c0_3 = arith.constant 0 : index
    %4 = vector.load %arg3[%c0_2, %c0_3] : memref<16x1xi32, #tpu.memory_space<vmem>>, vector<16x1xi32>
    %cst = arith.constant dense<0xFF800000> : vector<16xf32>
    %5 = vector.multi_reduction <maximumf>, %3, %cst [1] : vector<16x32xf32> to vector<16xf32>
    %6 = vector.shape_cast %5 : vector<16xf32> to vector<16x1xf32>
    %7 = vector.broadcast %6 : vector<16x1xf32> to vector<16x32xf32>
    %8 = arith.subf %3, %7 : vector<16x32xf32>
    %9 = math.exp %8 : vector<16x32xf32>
    %cst_4 = arith.constant dense<0.000000e+00> : vector<16xf32>
    %10 = vector.multi_reduction <add>, %9, %cst_4 [1] : vector<16x32xf32> to vector<16xf32>
    %11 = vector.shape_cast %10 : vector<16xf32> to vector<16x1xf32>
    %12 = math.log %11 : vector<16x1xf32>
    %cst_5 = arith.constant dense<0.000000e+00> : vector<16xf32>
    %13 = vector.multi_reduction <add>, %8, %cst_5 [1] : vector<16x32xf32> to vector<16xf32>
    %14 = vector.shape_cast %13 : vector<16xf32> to vector<16x1xf32>
    %cst_6 = arith.constant 3.200000e+01 : f32
    %15 = vector.broadcast %cst_6 : f32 to vector<16x1xf32>
    %16 = arith.mulf %15, %12 : vector<16x1xf32>
    %17 = arith.subf %14, %16 : vector<16x1xf32>
    %18 = tpu.iota {dimensions = array<i32: 1>} : vector<16x32xi32>
    %19 = vector.broadcast %4 : vector<16x1xi32> to vector<16x32xi32>
    %20 = arith.cmpi eq, %18, %19 : vector<16x32xi32>
    %cst_7 = arith.constant 0.000000e+00 : f32
    %21 = vector.broadcast %cst_7 : f32 to vector<16x32xf32>
    %22 = arith.select %20, %8, %21 : vector<16x32xi1>, vector<16x32xf32>
    %cst_8 = arith.constant dense<0.000000e+00> : vector<16xf32>
    %23 = vector.multi_reduction <add>, %22, %cst_8 [1] : vector<16x32xf32> to vector<16xf32>
    %24 = vector.shape_cast %23 : vector<16xf32> to vector<16x1xf32>
    %25 = arith.subf %24, %12 : vector<16x1xf32>
    %c1_i32 = arith.constant 1 : i32
    %26 = arith.muli %arg0, %c1_i32 : i32
    %27 = arith.addi %26, %arg1 : i32
    %c16_i32 = arith.constant 16 : i32
    %28 = arith.muli %27, %c16_i32 : i32
    %29 = tpu.iota {dimensions = array<i32: 0>} : vector<16x1xi32>
    %30 = vector.broadcast %28 : i32 to vector<16x1xi32>
    %31 = arith.addi %30, %29 : vector<16x1xi32>
    %c16_i32_9 = arith.constant 16 : i32
    %32 = vector.broadcast %c16_i32_9 : i32 to vector<16x1xi32>
    %33 = arith.cmpi slt, %31, %32 : vector<16x1xi32>
    %c0_10 = arith.constant 0 : index
    %c0_11 = arith.constant 0 : index
    %34 = vector.load %arg5[%c0_10, %c0_11] : memref<1x1xf32, #tpu.memory_space<vmem>>, vector<1x1xf32>
    %cst_12 = arith.constant 0.000000e+00 : f32
    %35 = vector.broadcast %cst_12 : f32 to vector<16x1xf32>
    %36 = arith.select %33, %17, %35 : vector<16x1xi1>, vector<16x1xf32>
    %37 = vector.shape_cast %36 : vector<16x1xf32> to vector<1x16x1xf32>
    %cst_13 = arith.constant dense<0.000000e+00> : vector<1xf32>
    %38 = vector.multi_reduction <add>, %37, %cst_13 [1, 2] : vector<1x16x1xf32> to vector<1xf32>
    %39 = vector.shape_cast %38 : vector<1xf32> to vector<1x1x1xf32>
    %40 = vector.extract %39[0, 0, 0] : f32 from vector<1x1x1xf32>
    %41 = vector.broadcast %40 : f32 to vector<1x1xf32>
    %42 = arith.addf %34, %41 : vector<1x1xf32>
    %c0_14 = arith.constant 0 : index
    %c0_15 = arith.constant 0 : index
    %43 = vector.load %arg5[%c0_14, %c0_15] : memref<1x1xf32, #tpu.memory_space<vmem>>, vector<1x1xf32>
    tpu.vector_store %arg5[%c0_14, %c0_15], %42 {strides = array<i32>} : memref<1x1xf32, #tpu.memory_space<vmem>>, vector<1x1xf32>,
    %c0_16 = arith.constant 0 : index
    %c0_17 = arith.constant 0 : index
    %44 = vector.load %arg6[%c0_16, %c0_17] : memref<1x1xf32, #tpu.memory_space<vmem>>, vector<1x1xf32>
    %cst_18 = arith.constant 0.000000e+00 : f32
    %45 = vector.broadcast %cst_18 : f32 to vector<16x1xf32>
    %46 = arith.select %33, %25, %45 : vector<16x1xi1>, vector<16x1xf32>
    %47 = vector.shape_cast %46 : vector<16x1xf32> to vector<1x16x1xf32>
    %cst_19 = arith.constant dense<0.000000e+00> : vector<1xf32>
    %48 = vector.multi_reduction <add>, %47, %cst_19 [1, 2] : vector<1x16x1xf32> to vector<1xf32>
    %49 = vector.shape_cast %48 : vector<1xf32> to vector<1x1x1xf32>
    %50 = vector.extract %49[0, 0, 0] : f32 from vector<1x1x1xf32>
    %51 = vector.broadcast %50 : f32 to vector<1x1xf32>
    %52 = arith.addf %44, %51 : vector<1x1xf32>
    %c0_20 = arith.constant 0 : index
    %c0_21 = arith.constant 0 : index
    %53 = vector.load %arg6[%c0_20, %c0_21] : memref<1x1xf32, #tpu.memory_space<vmem>>, vector<1x1xf32>
    tpu.vector_store %arg6[%c0_20, %c0_21], %52 {strides = array<i32>} : memref<1x1xf32, #tpu.memory_space<vmem>>, vector<1x1xf32>,
    %c0_i32_22 = arith.constant 0 : i32
    %54 = arith.cmpi eq, %arg1, %c0_i32_22 : i32
    %55 = arith.extui %54 : i1 to i32
    %c0_i32_23 = arith.constant 0 : i32
    %56 = arith.cmpi ne, %55, %c0_i32_23 : i32
    scf.if %56 {
      %c0_24 = arith.constant 0 : index
      %c0_25 = arith.constant 0 : index
      %57 = vector.load %arg5[%c0_24, %c0_25] : memref<1x1xf32, #tpu.memory_space<vmem>>, vector<1x1xf32>
      %58 = vector.shape_cast %57 : vector<1x1xf32> to vector<1x1x1xf32>
      %cst_26 = arith.constant dense<0.000000e+00> : vector<1xf32>
      %59 = vector.multi_reduction <add>, %58, %cst_26 [1, 2] : vector<1x1x1xf32> to vector<1xf32>
      %60 = vector.shape_cast %59 : vector<1xf32> to vector<1x1x1xf32>
      %61 = vector.extract %60[0, 0, 0] : f32 from vector<1x1x1xf32>
      %c0_27 = arith.constant 0 : index
      %c0_28 = arith.constant 0 : index
      %62 = vector.load %arg6[%c0_27, %c0_28] : memref<1x1xf32, #tpu.memory_space<vmem>>, vector<1x1xf32>
      %63 = vector.shape_cast %62 : vector<1x1xf32> to vector<1x1x1xf32>
      %cst_29 = arith.constant dense<0.000000e+00> : vector<1xf32>
      %64 = vector.multi_reduction <add>, %63, %cst_29 [1, 2] : vector<1x1x1xf32> to vector<1xf32>
      %65 = vector.shape_cast %64 : vector<1xf32> to vector<1x1x1xf32>
      %66 = vector.extract %65[0, 0, 0] : f32 from vector<1x1x1xf32>
      %67 = tpu.iota {dimensions = array<i32: 1>} : vector<8x128xi32>
      %c0_i32_30 = arith.constant 0 : i32
      %68 = vector.broadcast %c0_i32_30 : i32 to vector<8x128xi32>
      %69 = arith.cmpi eq, %67, %68 : vector<8x128xi32>
      %cst_31 = arith.constant 0.000000e+00 : f32
      %70 = vector.broadcast %61 : f32 to vector<8x128xf32>
      %71 = vector.broadcast %cst_31 : f32 to vector<8x128xf32>
      %72 = arith.select %69, %70, %71 : vector<8x128xi1>, vector<8x128xf32>
      %c1_i32_32 = arith.constant 1 : i32
      %73 = vector.broadcast %c1_i32_32 : i32 to vector<8x128xi32>
      %74 = arith.cmpi eq, %67, %73 : vector<8x128xi32>
      %cst_33 = arith.constant 0.000000e+00 : f32
      %75 = vector.broadcast %66 : f32 to vector<8x128xf32>
      %76 = vector.broadcast %cst_33 : f32 to vector<8x128xf32>
      %77 = arith.select %74, %75, %76 : vector<8x128xi1>, vector<8x128xf32>
      %78 = arith.addf %72, %77 : vector<8x128xf32>
      %c0_34 = arith.constant 0 : index
      %c0_35 = arith.constant 0 : index
      %79 = vector.load %arg4[%c0_34, %c0_35] : memref<8x128xf32, #tpu.memory_space<vmem>>, vector<8x128xf32>
      tpu.vector_store %arg4[%c0_34, %c0_35], %78 {strides = array<i32>} : memref<8x128xf32, #tpu.memory_space<vmem>>, vector<8x128xf32>,
    } else {
    }
    return
  }
  func.func @transform_0(%arg0: i32, %arg1: i32) -> (i32, i32) {
    %c1_i32 = arith.constant 1 : i32
    %0 = arith.muli %arg0, %c1_i32 : i32
    %1 = arith.addi %0, %arg1 : i32
    %c0_i32 = arith.constant 0 : i32
    %2 = arith.minsi %1, %c0_i32 : i32
    %c0_i32_0 = arith.constant 0 : i32
    %c0_i32_1 = arith.constant 0 : i32
    return %2, %c0_i32_0 : i32, i32
  }
  func.func @transform_1(%arg0: i32, %arg1: i32) -> (i32, i32) {
    %c1_i32 = arith.constant 1 : i32
    %0 = arith.muli %arg0, %c1_i32 : i32
    %1 = arith.addi %0, %arg1 : i32
    %c0_i32 = arith.constant 0 : i32
    %2 = arith.minsi %1, %c0_i32 : i32
    %c0_i32_0 = arith.constant 0 : i32
    %c0_i32_1 = arith.constant 0 : i32
    return %2, %c0_i32_0 : i32, i32
  }
  func.func @transform_2(%arg0: i32, %arg1: i32) -> (i32, i32) {
    %c0_i32 = arith.constant 0 : i32
    %c0_i32_0 = arith.constant 0 : i32
    return %arg0, %c0_i32 : i32, i32
  }
}

</mosaic_0001>

<llo_original>
// kernel: tpu_custom_call.1
$region0: #{tpu_custom_call.1}
  #allocation0 [shape = 'u32[]', space=smem, size = 0x4, offset = 0x4, fixed_abs, tag = 'smem constant byte address 0x4 - core index']
  #allocation1 [shape = 'u32[144,128]{1,0:T(1,128)}', space=vmem, size = 0x12000, scoped, tag = 'internal scratch']
  #allocation2 [shape = 'f32[1,1]{1,0:T(1,128)}', space=vmem, size = 0x200, scoped, tag = 'scratch operand']
  #allocation3 [shape = 'f32[1,1]{1,0:T(1,128)}', space=vmem, size = 0x200, scoped, tag = 'scratch operand']
  %s0 = inlined_call_operand.vmem [shape: f32[16,32], index: 0, kind: input, shape index: {}]
  %s1 = inlined_call_operand.vmem [shape: s32[16,1], index: 1, kind: input, shape index: {}]
  %s2 = inlined_call_operand.hbm [shape: f32[8,128], index: 2, kind: output, shape index: {}]
  %s3 = sld [smem:[#allocation0]]
  $region26: #{tpu_custom_call.1} parent=0
    _
  %s5 = ssub.s32 1, %s3
  %s6 = scalar_select 0, %s5, %s3
  $region1: #{tpu_custom_call.1} parent=0
    #allocation4 [shape = 'u8[4096]{0}', space=vmem, size = 0x1000, scoped, tag = 'output window, operand 0, single buffered']
    #allocation5 [shape = 's32[1]{0}', space=sflag, size = 0x4, scoped, tag = 'scoped memory for tpu_custom_call.1']
    %7 = vsyncpa [#allocation5], 0
    // Predicated region
    $region2: #{tpu_custom_call.1} parent=1 // pred_check
      _
    $region3: #{tpu_custom_call.1} parent=1 // pred_check_branch
      %9 = sbr.rel (0) target = $region5
    $region4: #{tpu_custom_call.1} parent=1 // pred_region
      %s10 = sadd.s32 0, 0
      %p11 = scmp.lt.s32.totalorder %s10, 0
      %s12 = scalar_select %p11, %s10, 0
      %s13 = smul.u32 2, %s12
      %p14 = scmp.lt.s32.totalorder %s13, 1
      %s15 = scalar_select %p14, %s13, 1
      %s16 = smul.addr %s15, 8
      %s17 = scalar_lea.vmem %s0, %s16
      %s18 = sadd.s32 0, 0
      %p19 = scmp.lt.s32.totalorder %s18, 0
      %s20 = scalar_select %p19, %s18, 0
      %s21 = smul.u32 2, %s20
    $region5: #{tpu_custom_call.1} parent=1 // pred_fallthru
      _
    // Predicated region
    $region6: #{tpu_custom_call.1} parent=1 // pred_check
      _
    $region7: #{tpu_custom_call.1} parent=1 // pred_check_branch
      %23 = sbr.rel (0) target = $region9
    $region8: #{tpu_custom_call.1} parent=1 // pred_region
      %s24 = sadd.s32 0, 0
      %p25 = scmp.lt.s32.totalorder %s24, 0
      %s26 = scalar_select %p25, %s24, 0
      %s27 = smul.u32 2, %s26
      %p28 = scmp.lt.s32.totalorder %s27, 1
      %s29 = scalar_select %p28, %s27, 1
      %s30 = smul.addr %s29, 8
      %s31 = scalar_lea.vmem %s1, %s30
      %s32 = sadd.s32 0, 0
      %p33 = scmp.lt.s32.totalorder %s32, 0
      %s34 = scalar_select %p33, %s32, 0
      %s35 = smul.u32 2, %s34
    $region9: #{tpu_custom_call.1} parent=1 // pred_fallthru
      _
    %s36 = sadd.s32 0, 0
    %p37 = scmp.lt.s32.totalorder %s36, 0
    %s38 = scalar_select %p37, %s36, 0
    %s39 = smul.u32 2, %s38
    %p40 = scmp.lt.s32.totalorder %s39, 1
    %s41 = scalar_select %p40, %s39, 1
    %s42 = smul.addr %s41, 8
    %s43 = scalar_lea.vmem %s0, %s42
    %s44 = sadd.s32 0, 0
    %p45 = scmp.lt.s32.totalorder %s44, 0
    %s46 = scalar_select %p45, %s44, 0
    %s47 = smul.u32 2, %s46
    %p48 = scmp.lt.s32.totalorder %s47, 1
    %s49 = scalar_select %p48, %s47, 1
    %s50 = smul.addr %s49, 8
    %s51 = scalar_lea.vmem %s1, %s50
    %s52 = sadd.s32 0, 0
    %p53 = scmp.lt.s32.totalorder %s52, 0
    %s54 = scalar_select %p53, %s52, 0
    %s55 = smul.u32 2, %s54
    %p56 = scmp.lt.s32.totalorder %s55, 1
    %s57 = scalar_select %p56, %s55, 1
    %s58 = smul.addr %s57, 8
    %s59 = scalar_lea.vmem %s0, %s58
    %s60 = sadd.s32 0, 0
    %p61 = scmp.lt.s32.totalorder %s60, 0
    %s62 = scalar_select %p61, %s60, 0
    %s63 = smul.u32 2, %s62
    %s64 = sadd.s32 0, 0
    %p65 = scmp.lt.s32.totalorder %s64, 0
    %s66 = scalar_select %p65, %s64, 0
    %s67 = smul.u32 2, %s66
    %p68 = scmp.lt.s32.totalorder %s67, 1
    %s69 = scalar_select %p68, %s67, 1
    %s70 = smul.addr %s69, 8
    %s71 = scalar_lea.vmem %s1, %s70
    %s72 = sadd.s32 0, 0
    %p73 = scmp.lt.s32.totalorder %s72, 0
    %s74 = scalar_select %p73, %s72, 0
    %s75 = smul.u32 2, %s74
    %p76 = scmp.eq.s32.totalorder 0, 0
    // Predicated region
    $region10: #{tpu_custom_call.1} parent=1 // pred_check
      %p77 = pneg %p76
    $region11: #{tpu_custom_call.1} parent=1 // pred_check_branch
      %79 = sbr.rel (%p77) target = $region13
    $region12: #{tpu_custom_call.1} parent=1 // pred_region
      %vm80 = vcmask 0
      %81 = vst.msk [vmem:[#allocation2] sm:$0x1] %vm80, 0.0
      %82 = vst.msk [vmem:[#allocation3] sm:$0x1] %vm80, 0.0
    $region13: #{tpu_custom_call.1} parent=1 // pred_fallthru
      _
    %v83 = vld [vmem:[%s59] sm:$0xff]
    %v84 = vld [vmem:[%s59 + $0x8] sm:$0xff]
    %v85 = vld [vmem:[%s71] sm:$0xff]
    %v86 = vld [vmem:[%s71 + $0x8] sm:$0xff]
    %vm87 = vcmask 261120
    %v88 = vsel %vm87, %v83, -inf
    %89 = vmax.xlane.f32.xlu0 %v88
    %v90 = vpop.xlane.xlu0 %89
    %v91 = vsel %vm87, %v84, -inf
    %92 = vmax.xlane.f32.xlu0 %v91
    %v93 = vpop.xlane.xlu0 %92
    %v94 = vsub.f32 %v83, %v90
    %v95 = vsub.f32 %v84, %v93
    %v96 = vmul.f32 %v94, 1.442695
    %v97 = vpow.pop %v96
    %v98 = vmul.f32 %v95, 1.442695
    %v99 = vpow.pop %v98
    %v100 = vsel %vm87, %v97, 0.0
    %101 = vadd.xlane.f32.xlu0 %v100
    %v102 = vpop.xlane.xlu0 %101
    %v103 = vsel %vm87, %v99, 0.0
    %104 = vadd.xlane.f32.xlu0 %v103
    %v105 = vpop.xlane.xlu0 %104
    %v106 = vlog2.pop %v102
    %v107 = vmul.f32 %v106, 0.6931472
    %v108 = vlog2.pop %v105
    %v109 = vmul.f32 %v108, 0.6931472
    %v110 = vsel %vm87, %v94, 0.0
    %111 = vadd.xlane.f32.xlu0 %v110
    %v112 = vpop.xlane.xlu0 %111
    %v113 = vsel %vm87, %v95, 0.0
    %114 = vadd.xlane.f32.xlu0 %v113
    %v115 = vpop.xlane.xlu0 %114
    %v116 = vmul.f32 %v107, 32.0
    %v117 = vmul.f32 %v109, 32.0
    %v118 = vsub.f32 %v112, %v116
    %v119 = vsub.f32 %v115, %v117
    %v120 = vlaneseq
    %v121 = vand.u32 %v120, 127
    %122 = vset.pattern.permute.xlu0 0
    %123 = vperm.xlu0 %122, %v85
    %v124 = vpop.permute.xlu0 %123
    %125 = vset.pattern.permute.xlu0 0
    %126 = vperm.xlu0 %125, %v86
    %v127 = vpop.permute.xlu0 %126
    %vm128 = vcmp.eq.s32.totalorder %v121, %v124
    %vm129 = vcmp.eq.s32.totalorder %v121, %v127
    %v130 = vsel %vm128, %v94, 0.0
    %v131 = vsel %vm129, %v95, 0.0
    %v132 = vsel %vm87, %v130, 0.0
    %133 = vadd.xlane.f32.xlu0 %v132
    %v134 = vpop.xlane.xlu0 %133
    %v135 = vsel %vm87, %v131, 0.0
    %136 = vadd.xlane.f32.xlu0 %v135
    %v137 = vpop.xlane.xlu0 %136
    %v138 = vsub.f32 %v134, %v107
    %v139 = vsub.f32 %v137, %v109
    %s140 = sadd.s32 0, 0
    %s141 = smul.u32 %s140, 16
    %v142 = vlaneseq
    %v143 = vshrl.u32 %v142, 7
    %v144 = vadd.s32 %v143, 8
    %v145 = vstv %s141
    %v146 = vadd.s32 %v145, %v143
    %v147 = vadd.s32 %v145, %v144
    %vm148 = vcmp.lt.s32.totalorder %v146, 16
    %vm149 = vcmp.lt.s32.totalorder %v147, 16
    %v150 = vld [vmem:[#allocation2] sm:$0x1]
    %v151 = vsel %vm148, %v118, 0.0
    %v152 = vsel %vm149, %v119, 0.0
    %vm153 = vcmask 7168
    %v154 = vsel %vm153, %v151, 0.0
    %v155 = vsel %vm153, %v152, 0.0
    %v156 = vadd.f32 %v154, %v155
    %157 = vadd.xlane.f32.xlu0 %v156
    %v158 = vpop.xlane.xlu0 %157
    %v159 = vrot.slane %v158, 4
    %v160 = vadd.f32 %v158, %v159
    %v161 = vrot.slane %v160, 2
    %v162 = vadd.f32 %v160, %v161
    %v163 = vrot.slane %v162, 1
    %v164 = vadd.f32 %v162, %v163
    %s165 = vtos %v164
    %v166 = vstv %s165
    %v167 = vadd.f32 %v150, %v166
    %vm168 = vcmask 0
    %169 = vst.msk [vmem:[#allocation2] sm:$0x1] %vm168, %v167
    %v170 = vld [vmem:[#allocation3] sm:$0x1]
    %v171 = vsel %vm148, %v138, 0.0
    %v172 = vsel %vm149, %v139, 0.0
    %v173 = vsel %vm153, %v171, 0.0
    %v174 = vsel %vm153, %v172, 0.0
    %v175 = vadd.f32 %v173, %v174
    %176 = vadd.xlane.f32.xlu0 %v175
    %v177 = vpop.xlane.xlu0 %176
    %v178 = vrot.slane %v177, 4
    %v179 = vadd.f32 %v177, %v178
    %v180 = vrot.slane %v179, 2
    %v181 = vadd.f32 %v179, %v180
    %v182 = vrot.slane %v181, 1
    %v183 = vadd.f32 %v181, %v182
    %s184 = vtos %v183
    %v185 = vstv %s184
    %v186 = vadd.f32 %v170, %v185
    %187 = vst.msk [vmem:[#allocation3] sm:$0x1] %vm168, %v186
    // Predicated region
    $region14: #{tpu_custom_call.1} parent=1 // pred_check
      %p188 = pneg %p76
    $region15: #{tpu_custom_call.1} parent=1 // pred_check_branch
      %190 = sbr.rel (%p188) target = $region17
    $region16: #{tpu_custom_call.1} parent=1 // pred_region
      %v191 = vld [vmem:[#allocation2] sm:$0x1]
      %v192 = vadd.f32 %v191, 0.0
      %s193 = vtos %v192
      %v194 = vld [vmem:[#allocation3] sm:$0x1]
      %v195 = vadd.f32 %v194, 0.0
      %s196 = vtos %v195
      %vm197 = vcmp.eq.s32.totalorder %v121, 0
      %v198 = vstv %s193
      %v199 = vsel %vm197, %v198, 0.0
      %vm200 = vcmp.eq.s32.totalorder %v121, 1
      %v201 = vstv %s196
      %v202 = vsel %vm200, %v201, 0.0
      %v203 = vadd.f32 %v199, %v202
      %204 = vst [vmem:[#allocation4] sm:$0xff] %v203
    $region17: #{tpu_custom_call.1} parent=1 // pred_fallthru
      _
    // Predicated region
    $region18: #{tpu_custom_call.1} parent=1 // pred_check
      _
    $region19: #{tpu_custom_call.1} parent=1 // pred_check_branch
      %206 = sbr.rel (0) target = $region21
    $region20: #{tpu_custom_call.1} parent=1 // pred_region
      %s208 = ssub.s32 128, 128
      %209 = vsyncadd [#allocation5], %s208
      %s211 = sshll.u32 [#allocation4], 4
      %s212 = int_to_ptr.vmem [resolvable:$true] %s211
      %214 = dma.vmem_to_hbm [thread:$0]  %s212, 128, %s2, [#allocation5]
    $region21: #{tpu_custom_call.1} parent=1 // pred_fallthru
      _
    // Predicated region
    $region22: #{tpu_custom_call.1} parent=1 // pred_check
      _
    $region23: #{tpu_custom_call.1} parent=1 // pred_check_branch
      %216 = sbr.rel (0) target = $region25
    $region24: #{tpu_custom_call.1} parent=1 // pred_region
      %217 = dma.done [#allocation5], 128
    $region25: #{tpu_custom_call.1} parent=1 // pred_fallthru
      _
    %218 = vsyncpa [#allocation5], 1

</llo_original>
